<compile_context>
chip_gen: v6e
topology: v6e:2x2x1
jax: 0.10.0
libtpu: 0.0.40
codegen_flags: <defaults>
</compile_context>

<pallas_src>
import functools
import math

import jax
import jax.numpy as jnp
from jax.experimental import pallas as pl
from jax.experimental.pallas import tpu as pltpu


def _mgp_kernel(x_ref, w_ref, b_ref, out_ref, *, g, act):
    """Fused forward for one batch tile.

    x_ref:   (TB, D)      float32 (cast on-chip to w_ref.dtype for the matmul)
    w_ref:   (D, N_pad)   compute dtype; columns = [pi | sc | ls | sigma | mu | 0-pad]
    b_ref:   (1, N_pad)   float32
    out_ref: (TB, N_pad)  float32; same column layout, activations applied to
                          the first `act` lanes only (act is a multiple of 128).
    """
    x = x_ref[...].astype(w_ref.dtype)          # on-chip cast (bf16 fast path)
    # One wide MXU matmul, f32 accumulation.
    y = jnp.dot(x, w_ref[...], preferred_element_type=jnp.float32)
    y = y + b_ref[...].astype(jnp.float32)

    n_pad = out_ref.shape[-1]

    # ---- activation region: first `act` lanes only (lane-aligned slice) ----
    y_act = y[:, :act]
    col = jax.lax.broadcasted_iota(jnp.int32, (1, act), 1)   # broadcast over sublanes
    is_pi = col < g                                  # softmax region
    is_sp = jnp.logical_and(col >= g, col < 3 * g)   # softplus region

    # masked, numerically stable softmax over the pi columns
    neg_inf = jnp.float32(-jnp.inf)
    logits = jnp.where(is_pi, y_act, neg_inf)
    m = jnp.max(logits, axis=-1, keepdims=True)
    e = jnp.exp(jnp.where(is_pi, y_act - m, neg_inf))        # exp(-inf) = 0 elsewhere
    denom = jnp.sum(e, axis=-1, keepdims=True)
    # approx=False keeps exact row-sum-to-1 normalization (matches PyTorch).
    pi = e * pl.reciprocal(denom, approx=False)

    # stable softplus for sigma_coef / lengthscale columns
    sp = jnp.logaddexp(y_act, 0.0)

    act_out = jnp.where(is_pi, pi, jnp.where(is_sp, sp, y_act))
    out_ref[:, :act] = act_out.astype(out_ref.dtype)

    # ---- identity region: raw matmul result, no transcendentals / selects ----
    if act < n_pad:                                   # static (trace-time) branch
        out_ref[:, act:] = y[:, act:].astype(out_ref.dtype)


def fuse_mgp_params(params, num_gaussians, out_features, *,
                    compute_dtype=jnp.float32):
    """Fuse the five linear heads into one (D, N_pad) weight + (1, N_pad) bias.

    Call this ONCE (outside the per-step path); the result is what
    mgp_forward consumes.  Column order: [pi | sigma_coef | lengthscale |
    sigma | mu | zero-pad].
    """
    G, O = num_gaussians, out_features
    total = 3 * G + 2 * G * O
    n_pad = pl.cdiv(total, 128) * 128                 # lane-dense width
    w = jnp.concatenate([params["w_pi"], params["w_sc"], params["w_ls"],
                         params["w_sig"], params["w_mu"]], axis=1)
    b = jnp.concatenate([params["b_pi"], params["b_sc"], params["b_ls"],
                         params["b_sig"], params["b_mu"]], axis=1)
    if n_pad > total:
        w = jnp.pad(w, ((0, 0), (0, n_pad - total)))
        b = jnp.pad(b, ((0, 0), (0, n_pad - total)))
    return w.astype(compute_dtype), b.astype(jnp.float32)


def mgp_forward(x, w_fused, b_fused, num_gaussians, out_features, *,
                block_batch=2048):
    """Fused MGP forward.

    x: (B, D) float32; w_fused/b_fused from fuse_mgp_params.
    Returns (pi, sigma, sigma_coef, lengthscale, mu) with shapes
    (B, G), (B, G, O), (B, G), (B, G), (B, G, O), all float32.
    """
    B, D = x.shape
    G, O = num_gaussians, out_features
    GO = G * O
    n_pad = w_fused.shape[1]
    act = min(pl.cdiv(3 * G, 128) * 128, n_pad)       # activation lane region

    # ---- batch tile under a conservative cross-generation VMEM budget ----
    bytes_w = jnp.dtype(w_fused.dtype).itemsize
    fixed = 2 * D * n_pad * bytes_w + 2 * n_pad * 4   # resident W/b (worst-case 2x buffers)
    per_row = 2 * (D + n_pad) * 4                     # x + out tiles, f32, double-buffered
    budget = 40 << 20                                 # safe on v5e/v6e/v7x
    avail = max(0, budget - fixed)
    tb_cap = max(8, (avail // per_row) // 8 * 8)
    TB = min(block_batch, tb_cap, pl.cdiv(B, 8) * 8)
    TB = max(8, (TB // 8) * 8)
    # Keep >=2 grid steps when the batch allows it so the "parallel" axis can
    # shard across both TensorCores on v7x (megacore).
    if TB >= B and B >= 16:
        TB = max(8, pl.cdiv(pl.cdiv(B, 2), 8) * 8)
    grid = (pl.cdiv(B, TB),)                          # partial last block is masked

    vmem_need = fixed + TB * per_row + (8 << 20)      # + headroom for y / spill
    vmem_limit = int(min(max(vmem_need, 32 << 20), 56 << 20))

    out_slab = pl.pallas_call(
        functools.partial(_mgp_kernel, g=G, act=act),
        grid=grid,
        in_specs=[
            pl.BlockSpec((TB, D), lambda i: (i, 0)),      # x tile (pipelined)
            pl.BlockSpec((D, n_pad), lambda i: (0, 0)),   # fused W (resident)
            pl.BlockSpec((1, n_pad), lambda i: (0, 0)),   # fused b (resident)
        ],
        out_specs=pl.BlockSpec((TB, n_pad), lambda i: (i, 0)),
        out_shape=jax.ShapeDtypeStruct((B, n_pad), jnp.float32),
        compiler_params=pltpu.CompilerParams(
            dimension_semantics=("parallel",),
            vmem_limit_bytes=vmem_limit),
    )(x, w_fused, b_fused)

    # Slice the lane-dense slab into the PyTorch-shaped outputs (downstream
    # code may instead consume the slab directly to skip these XLA copies).
    pi = out_slab[:, :G]
    sigma_coef = out_slab[:, G:2 * G]
    lengthscale = out_slab[:, 2 * G:3 * G]
    sigma = out_slab[:, 3 * G:3 * G + GO].reshape(B, G, O)
    mu = out_slab[:, 3 * G + GO:3 * G + 2 * GO].reshape(B, G, O)
    return pi, sigma, sigma_coef, lengthscale, mu


def init_mgp_params(key, in_features, out_features, num_gaussians):
    """Parameter init mirroring the PyTorch module's shapes.

    Weights use xavier_uniform (gain=1), biases use the default nn.Linear
    uniform(-1/sqrt(fan_in), 1/sqrt(fan_in)) init.  Weights are stored
    transposed relative to PyTorch, as (in, out), for direct x @ W.
    """
    def xavier(k, fan_in, fan_out):
        bound = math.sqrt(6.0 / (fan_in + fan_out))
        return jax.random.uniform(k, (fan_in, fan_out), jnp.float32, -bound, bound)

    def bias(k, fan_in, fan_out):
        bound = 1.0 / math.sqrt(fan_in)
        return jax.random.uniform(k, (1, fan_out), jnp.float32, -bound, bound)

    D, O, G = in_features, out_features, num_gaussians
    keys = jax.random.split(key, 10)
    return {
        "w_pi": xavier(keys[0], D, G),      "b_pi": bias(keys[1], D, G),
        "w_sc": xavier(keys[2], D, G),      "b_sc": bias(keys[3], D, G),
        "w_ls": xavier(keys[4], D, G),      "b_ls": bias(keys[5], D, G),
        "w_sig": xavier(keys[6], D, G * O), "b_sig": bias(keys[7], D, G * O),
        "w_mu": xavier(keys[8], D, G * O),  "b_mu": bias(keys[9], D, G * O),
    }


def mgp_reference(x, params, num_gaussians, out_features):
    """Pure-JAX reference of the PyTorch forward for correctness checking."""
    B = x.shape[0]
    pi = jax.nn.softmax(x @ params["w_pi"] + params["b_pi"], axis=1)
    sigma_coef = jax.nn.softplus(x @ params["w_sc"] + params["b_sc"])
    lengthscale = jax.nn.softplus(x @ params["w_ls"] + params["b_ls"])
    sigma = (x @ params["w_sig"] + params["b_sig"]).reshape(
        B, num_gaussians, out_features)
    mu = (x @ params["w_mu"] + params["b_mu"]).reshape(
        B, num_gaussians, out_features)
    return pi, sigma, sigma_coef, lengthscale, mu


if __name__ == "__main__":
    in_features = 32
    out_features = 4
    num_gaussians = 8
    batch = 8

    key = jax.random.PRNGKey(0)
    k_x, k_p = jax.random.split(key)
    x = jax.random.normal(k_x, (batch, in_features), jnp.float32)
    params = init_mgp_params(k_p, in_features, out_features, num_gaussians)

    names = ["pi", "sigma", "sigma_coef", "lengthscale", "mu"]
    refs = mgp_reference(x, params, num_gaussians, out_features)

    # f32 path: must match the PyTorch semantics tightly.
    w_f32, b_f32 = fuse_mgp_params(params, num_gaussians, out_features)
    outs = mgp_forward(x, w_f32, b_f32, num_gaussians, out_features)
    outs = jax.block_until_ready(outs)
    for name, got, ref in zip(names, outs, refs):
        assert got.shape == ref.shape, (name, got.shape, ref.shape)
        assert jnp.allclose(got, ref, atol=1e-5, rtol=1e-5), name

    # bf16 fast path: bf16 weights + on-chip x cast, f32 accumulation and
    # f32 activation math.
    w_bf16, b_bf16 = fuse_mgp_params(params, num_gaussians, out_features,
                                     compute_dtype=jnp.bfloat16)
    outs_bf16 = jax.block_until_ready(
        mgp_forward(x, w_bf16, b_bf16, num_gaussians, out_features))
    for name, got, ref in zip(names, outs_bf16, refs):
        assert got.shape == ref.shape, (name, got.shape, ref.shape)
        assert jnp.allclose(got, ref, atol=1e-1, rtol=1e-1), name  # coarse check

    print("KERNEL_OK")
</pallas_src>

<mosaic_0001>
module attributes {stable_mosaic.version = 11 : i64} {
  func.func @_mgp_kernel(%arg0: i32, %arg1: memref<8x32xf32, #tpu.memory_space<vmem>>, %arg2: memref<32x128xf32, #tpu.memory_space<vmem>>, %arg3: memref<1x128xf32, #tpu.memory_space<vmem>>, %arg4: memref<8x128xf32, #tpu.memory_space<vmem>>) attributes {dimension_semantics = [#tpu.dimension_semantics<parallel>], iteration_bounds = array<i64: 1>, scalar_prefetch = 0 : i64, scratch_operands = 0 : i64, tpu.core_type = #tpu.core_type<tc>, window_params = [{transform_indices = @transform_0, window_bounds = array<i64: 8, 32>}, {pipeline_mode = #tpu.pipeline_mode<synchronous>, transform_indices = @transform_1, window_bounds = array<i64: 32, 128>}, {pipeline_mode = #tpu.pipeline_mode<synchronous>, transform_indices = @transform_2, window_bounds = array<i64: 1, 128>}, {transform_indices = @transform_3, window_bounds = array<i64: 8, 128>}]} {
    %c0 = arith.constant 0 : index
    %c0_0 = arith.constant 0 : index
    %0 = vector.load %arg1[%c0, %c0_0] : memref<8x32xf32, #tpu.memory_space<vmem>>, vector<8x32xf32>
    %c0_1 = arith.constant 0 : index
    %c0_2 = arith.constant 0 : index
    %1 = vector.load %arg2[%c0_1, %c0_2] : memref<32x128xf32, #tpu.memory_space<vmem>>, vector<32x128xf32>
    %cst = arith.constant dense<0.000000e+00> : vector<8x128xf32>
    %2 = tpu.matmul %0, %1, %cst {dimension_numbers = #tpu.dot_dimension_numbers<[1], [0], [0], [1], [0, 0, 1, 1], [], []>} : vector<8x32xf32>, vector<32x128xf32>, vector<8x128xf32> -> vector<8x128xf32>
    %c0_3 = arith.constant 0 : index
    %c0_4 = arith.constant 0 : index
    %3 = vector.load %arg3[%c0_3, %c0_4] : memref<1x128xf32, #tpu.memory_space<vmem>>, vector<1x128xf32>
    %4 = vector.broadcast %3 : vector<1x128xf32> to vector<8x128xf32>
    %5 = arith.addf %2, %4 : vector<8x128xf32>
    %6 = tpu.iota {dimensions = array<i32: 1>} : vector<1x128xi32>
    %c8_i32 = arith.constant 8 : i32
    %7 = vector.broadcast %c8_i32 : i32 to vector<1x128xi32>
    %8 = arith.cmpi slt, %6, %7 : vector<1x128xi32>
    %c8_i32_5 = arith.constant 8 : i32
    %9 = vector.broadcast %c8_i32_5 : i32 to vector<1x128xi32>
    %10 = arith.cmpi sge, %6, %9 : vector<1x128xi32>
    %c24_i32 = arith.constant 24 : i32
    %11 = vector.broadcast %c24_i32 : i32 to vector<1x128xi32>
    %12 = arith.cmpi slt, %6, %11 : vector<1x128xi32>
    %13 = arith.andi %10, %12 : vector<1x128xi1>
    %cst_6 = arith.constant 0xFF800000 : f32
    %14 = vector.shape_cast %8 : vector<1x128xi1> to vector<1x128xi1>
    %15 = vector.broadcast %14 : vector<1x128xi1> to vector<8x128xi1>
    %16 = vector.broadcast %cst_6 : f32 to vector<8x128xf32>
    %17 = arith.select %15, %5, %16 : vector<8x128xi1>, vector<8x128xf32>
    %cst_7 = arith.constant dense<0xFF800000> : vector<8xf32>
    %18 = vector.multi_reduction <maximumf>, %17, %cst_7 [1] : vector<8x128xf32> to vector<8xf32>
    %19 = vector.shape_cast %18 : vector<8xf32> to vector<8x1xf32>
    %20 = vector.broadcast %19 : vector<8x1xf32> to vector<8x128xf32>
    %21 = arith.subf %5, %20 : vector<8x128xf32>
    %cst_8 = arith.constant 0xFF800000 : f32
    %22 = vector.shape_cast %8 : vector<1x128xi1> to vector<1x128xi1>
    %23 = vector.broadcast %22 : vector<1x128xi1> to vector<8x128xi1>
    %24 = vector.broadcast %cst_8 : f32 to vector<8x128xf32>
    %25 = arith.select %23, %21, %24 : vector<8x128xi1>, vector<8x128xf32>
    %26 = math.exp %25 : vector<8x128xf32>
    %cst_9 = arith.constant dense<0.000000e+00> : vector<8xf32>
    %27 = vector.multi_reduction <add>, %26, %cst_9 [1] : vector<8x128xf32> to vector<8xf32>
    %28 = vector.shape_cast %27 : vector<8xf32> to vector<8x1xf32>
    %29 = tpu.reciprocal %28 : vector<8x1xf32> -> vector<8x1xf32>
    %30 = vector.broadcast %29 : vector<8x1xf32> to vector<8x128xf32>
    %31 = arith.mulf %26, %30 : vector<8x128xf32>
    %cst_10 = arith.constant 0.000000e+00 : f32
    %32 = vector.broadcast %cst_10 : f32 to vector<8x128xf32>
    %33 = arith.maximumf %5, %32 : vector<8x128xf32>
    %34 = vector.broadcast %cst_10 : f32 to vector<8x128xf32>
    %35 = arith.subf %5, %34 : vector<8x128xf32>
    %36 = arith.cmpf one, %35, %35 : vector<8x128xf32>
    %37 = vector.broadcast %cst_10 : f32 to vector<8x128xf32>
    %38 = arith.addf %5, %37 : vector<8x128xf32>
    %39 = math.absf %35 : vector<8x128xf32>
    %cst_11 = arith.constant 0.000000e+00 : f32
    %40 = vector.broadcast %cst_11 : f32 to vector<8x128xf32>
    %41 = arith.subf %40, %39 : vector<8x128xf32>
    %42 = math.exp %41 : vector<8x128xf32>
    %43 = math.log1p %42 : vector<8x128xf32>
    %44 = arith.addf %33, %43 : vector<8x128xf32>
    %45 = arith.select %36, %38, %44 : vector<8x128xi1>, vector<8x128xf32>
    %46 = vector.shape_cast %13 : vector<1x128xi1> to vector<1x128xi1>
    %47 = vector.broadcast %46 : vector<1x128xi1> to vector<8x128xi1>
    %48 = arith.select %47, %45, %5 : vector<8x128xi1>, vector<8x128xf32>
    %49 = vector.shape_cast %8 : vector<1x128xi1> to vector<1x128xi1>
    %50 = vector.broadcast %49 : vector<1x128xi1> to vector<8x128xi1>
    %51 = arith.select %50, %31, %48 : vector<8x128xi1>, vector<8x128xf32>
    %c0_12 = arith.constant 0 : index
    %c0_13 = arith.constant 0 : index
    %52 = vector.load %arg4[%c0_12, %c0_13] : memref<8x128xf32, #tpu.memory_space<vmem>>, vector<8x128xf32>
    tpu.vector_store %arg4[%c0_12, %c0_13], %51 {strides = array<i32>} : memref<8x128xf32, #tpu.memory_space<vmem>>, vector<8x128xf32>,
    return
  }
  func.func @transform_0(%arg0: i32) -> (i32, i32) {
    %c0_i32 = arith.constant 0 : i32
    %c0_i32_0 = arith.constant 0 : i32
    return %arg0, %c0_i32 : i32, i32
  }
  func.func @transform_1(%arg0: i32) -> (i32, i32) {
    %c0_i32 = arith.constant 0 : i32
    %c0_i32_0 = arith.constant 0 : i32
    %c0_i32_1 = arith.constant 0 : i32
    return %c0_i32, %c0_i32_0 : i32, i32
  }
  func.func @transform_2(%arg0: i32) -> (i32, i32) {
    %c0_i32 = arith.constant 0 : i32
    %c0_i32_0 = arith.constant 0 : i32
    %c0_i32_1 = arith.constant 0 : i32
    return %c0_i32, %c0_i32_0 : i32, i32
  }
  func.func @transform_3(%arg0: i32) -> (i32, i32) {
    %c0_i32 = arith.constant 0 : i32
    %c0_i32_0 = arith.constant 0 : i32
    return %arg0, %c0_i32 : i32, i32
  }
}

</mosaic_0001>

<llo_original>
// kernel: tpu_custom_call.1
$region0: #{tpu_custom_call.1}
  #allocation0 [shape = 'u32[]', space=smem, size = 0x4, offset = 0x4, fixed_abs, tag = 'smem constant byte address 0x4 - core index']
  #allocation1 [shape = 'u32[144,128]{1,0:T(1,128)}', space=vmem, size = 0x12000, scoped, tag = 'internal scratch']
  %s0 = inlined_call_operand.hbm [shape: f32[8,32], index: 0, kind: input, shape index: {}]
  %s1 = inlined_call_operand.hbm [shape: f32[32,128], index: 1, kind: input, shape index: {}]
  %s2 = inlined_call_operand.vmem [shape: f32[1,128], index: 2, kind: input, shape index: {}]
  %s3 = inlined_call_operand.hbm [shape: f32[8,128], index: 3, kind: output, shape index: {}]
  %s4 = sld [smem:[#allocation0]]
  $region30: #{tpu_custom_call.1} parent=0
    _
  %s6 = ssub.s32 1, %s4
  %s7 = scalar_select 0, %s6, %s4
  $region1: #{tpu_custom_call.1} parent=0
    #allocation2 [shape = 'u8[4096]{0}', space=vmem, size = 0x1000, scoped, tag = 'input window, operand 0, single buffered']
    #allocation3 [shape = 's32[1]{0}', space=sflag, size = 0x4, scoped, tag = 'scoped memory for tpu_custom_call.1']
    #allocation4 [shape = 's32[1]{0}', space=sflag, size = 0x4, scoped, tag = 'scoped memory for tpu_custom_call.1']
    #allocation5 [shape = 'u8[16384]{0}', space=vmem, size = 0x4000, scoped, tag = 'input window, operand 1, single buffered']
    #allocation6 [shape = 's32[1]{0}', space=sflag, size = 0x4, scoped, tag = 'scoped memory for tpu_custom_call.1']
    #allocation7 [shape = 'u8[4096]{0}', space=vmem, size = 0x1000, scoped, tag = 'output window, operand 0, single buffered']
    %8 = vsyncpa [#allocation3], 0
    %9 = vsyncpa [#allocation6], 0
    %10 = vsyncpa [#allocation4], 0
    // Predicated region
    $region2: #{tpu_custom_call.1} parent=1 // pred_check
      _
    $region3: #{tpu_custom_call.1} parent=1 // pred_check_branch
      %12 = sbr.rel (0) target = $region5
    $region4: #{tpu_custom_call.1} parent=1 // pred_region
      %s14 = ssub.s32 128, 128
      %15 = vsyncadd [#allocation3], %s14
      %s17 = sshll.u32 [#allocation2], 4
      %s18 = int_to_ptr.vmem [resolvable:$true] %s17
      %20 = dma.hbm_to_vmem [thread:$0]  %s0, 128, %s18, [#allocation3]
    $region5: #{tpu_custom_call.1} parent=1 // pred_fallthru
      _
    // Predicated region
    $region6: #{tpu_custom_call.1} parent=1 // pred_check
      _
    $region7: #{tpu_custom_call.1} parent=1 // pred_check_branch
      %22 = sbr.rel (0) target = $region9
    $region8: #{tpu_custom_call.1} parent=1 // pred_region
      %s24 = ssub.s32 512, 512
      %25 = vsyncadd [#allocation6], %s24
      %s26 = sshll.u32 [#allocation5], 4
      %s27 = int_to_ptr.vmem [resolvable:$true] %s26
      %32 = dma.hbm_to_vmem [thread:$0]  %s1, 512, %s27, [#allocation6], 128, 128, 8
    $region9: #{tpu_custom_call.1} parent=1 // pred_fallthru
      _
    // Predicated region
    $region10: #{tpu_custom_call.1} parent=1 // pred_check
      _
    $region11: #{tpu_custom_call.1} parent=1 // pred_check_branch
      %34 = sbr.rel (0) target = $region13
    $region12: #{tpu_custom_call.1} parent=1 // pred_region
      _
    $region13: #{tpu_custom_call.1} parent=1 // pred_fallthru
      _
    // Predicated region
    $region14: #{tpu_custom_call.1} parent=1 // pred_check
      _
    $region15: #{tpu_custom_call.1} parent=1 // pred_check_branch
      %36 = sbr.rel (0) target = $region17
    $region16: #{tpu_custom_call.1} parent=1 // pred_region
      %37 = dma.done [#allocation3], 128
    $region17: #{tpu_custom_call.1} parent=1 // pred_fallthru
      _
    // Predicated region
    $region18: #{tpu_custom_call.1} parent=1 // pred_check
      _
    $region19: #{tpu_custom_call.1} parent=1 // pred_check_branch
      %39 = sbr.rel (0) target = $region21
    $region20: #{tpu_custom_call.1} parent=1 // pred_region
      %40 = dma.done [#allocation6], 512
    $region21: #{tpu_custom_call.1} parent=1 // pred_fallthru
      _
    %v41 = vld [vmem:[#allocation2] sm:$0xff]
    %v42 = vld [vmem:[#allocation5] sm:$0xff]
    %v43 = vld [vmem:[#allocation5 + $0x8] sm:$0xff]
    %v44 = vld [vmem:[#allocation5 + $0x10] sm:$0xff]
    %v45 = vld [vmem:[#allocation5 + $0x18] sm:$0xff]
    %v46 = vld [vmem:[%s2] sm:$0x1]
    %v48 = vlaneseq
    %v49 = vshrl.u32 %v48, 7
    %v50 = vsub.s32 0, %v49
    %v51 = vrot.slane %v46, %v50
    %vm53 = vcmask 261120
    %v55 = vsel %vm53, %v41, 0
    %57 = vmatprep.subr.mxu0 0.0
    %58 = vmatpush1.msra.mxu0 0.0
    %59 = vmatprep.subr.mxu0 0.0
    %60 = vmatpush1.msra.mxu0 0.0
    %61 = vmatprep.subr.mxu0 0.0
    %62 = vmatpush1.msra.mxu0 0.0
    %63 = vmatprep.subr.mxu0 0.0
    %64 = vmatpush1.msra.mxu0 0.0
    %65 = vmatprep.subr.mxu0 0.0
    %66 = vmatpush1.msra.mxu0 0.0
    %67 = vmatprep.subr.mxu0 0.0
    %68 = vmatpush1.msra.mxu0 0.0
    %69 = vmatprep.subr.mxu0 0.0
    %70 = vmatpush1.msra.mxu0 0.0
    %71 = vmatprep.subr.mxu0 0.0
    %72 = vmatpush1.msra.mxu0 0.0
    %73 = vmatprep.subr.mxu0 0.0
    %74 = vmatpush1.msra.mxu0 0.0
    %75 = vmatprep.subr.mxu0 0.0
    %76 = vmatpush1.msra.mxu0 0.0
    %77 = vmatprep.subr.mxu0 0.0
    %78 = vmatpush1.msra.mxu0 0.0
    %79 = vmatprep.subr.mxu0 0.0
    %80 = vmatpush1.msra.mxu0 0.0
    %81 = vmatprep.subr.mxu0 0.0
    %82 = vmatpush1.msra.mxu0 %v45
    %83 = vmatprep.subr.mxu0 0.0
    %84 = vmatpush1.msra.mxu0 %v44
    %85 = vmatprep.subr.mxu0 0.0
    %86 = vmatpush1.msra.mxu0 %v43
    %87 = vmatprep.subr.mxu0 0.0
    %88 = vmatpush1.msra.mxu0 %v42
    %89 = vmatprep.subr.mxu0 0.0
    %90 = vmatpush2.msra.mxu0 0.0
    %91 = vmatprep.subr.mxu0 0.0
    %92 = vmatpush2.msra.mxu0 0.0
    %93 = vmatprep.subr.mxu0 0.0
    %94 = vmatpush2.msra.mxu0 0.0
    %95 = vmatprep.subr.mxu0 0.0
    %96 = vmatpush2.msra.mxu0 0.0
    %97 = vmatprep.subr.mxu0 0.0
    %98 = vmatpush2.msra.mxu0 0.0
    %99 = vmatprep.subr.mxu0 0.0
    %100 = vmatpush2.msra.mxu0 0.0
    %101 = vmatprep.subr.mxu0 0.0
    %102 = vmatpush2.msra.mxu0 0.0
    %103 = vmatprep.subr.mxu0 0.0
    %104 = vmatpush2.msra.mxu0 0.0
    %105 = vmatprep.subr.mxu0 0.0
    %106 = vmatpush2.msra.mxu0 0.0
    %107 = vmatprep.subr.mxu0 0.0
    %108 = vmatpush2.msra.mxu0 0.0
    %109 = vmatprep.subr.mxu0 0.0
    %110 = vmatpush2.msra.mxu0 0.0
    %111 = vmatprep.subr.mxu0 0.0
    %112 = vmatpush2.msra.mxu0 0.0
    %113 = vmatprep.subr.mxu0 0.0
    %114 = vmatpush2.msra.mxu0 0.0
    %115 = vmatprep.subr.mxu0 0.0
    %116 = vmatpush2.msra.mxu0 0.0
    %117 = vmatprep.subr.mxu0 0.0
    %118 = vmatpush2.msra.mxu0 0.0
    %119 = vmatprep.subr.mxu0 0.0
    %120 = vmatpush2.msra.mxu0 0.0
    %121 = vmatprep.mubr.f32.mxu0 0.0
    %122 = vmatmul.mubr.f32.gmra.mxu0 %v55
    %v123 = vpop.f32.mrf.mxu0
    %v124 = vadd.f32 %v51, %v123
    %v125 = vpop.f32.mrf.mxu0
    %126 = vdwg.mxu0
    %v127 = vlaneseq
    %v128 = vand.u32 %v127, 127
    %vm129 = vcmp.lt.s32.totalorder %v128, 8
    %vm130 = vcmp.ge.s32.totalorder %v128, 8
    %vm131 = vcmp.lt.s32.totalorder %v128, 24
    %vm132 = vmand %vm130, %vm131
    %v133 = vsel %vm129, 1, 0
    %vm134 = vcmp.eq.s32.totalorder %v133, 1
    %v135 = vsel %vm134, %v124, -inf
    %136 = vmax.xlane.f32.xlu0 %v135
    %v137 = vpop.xlane.xlu0 %136
    %v138 = vsub.f32 %v124, %v137
    %v139 = vsel %vm134, %v138, -inf
    %v140 = vmul.f32 %v139, 1.442695
    %v141 = vpow.pop %v140
    %142 = vadd.xlane.f32.xlu0 %v141
    %v143 = vpop.xlane.xlu0 %142
    %v144 = vrcp.pop %v143
    %v145 = vmul.f32 %v141, %v144
    %v146 = vmax.f32 %v124, 0.0
    %vm147 = vcmp.ne.f32.partialorder %v124, %v124
    %v148 = vadd.f32 %v124, 0.0
    %v149 = vand.u32 2147483647, %v124
    %v150 = vsub.f32 0.0, %v149
    %v151 = vmul.f32 %v150, 1.442695
    %v152 = vpow.pop %v151
    %v153 = vadd.f32 %v152, 1.0
    %v154 = vlog2.pop %v153
    %v155 = vmul.f32 %v154, 0.6931472
    %v156 = vmul.f32 -0.5, %v152
    %v157 = vadd.f32 %v156, 1.0
    %v158 = vmul.f32 %v157, %v152
    %v159 = vand.u32 2147483647, %v152
    %vm160 = vcmp.lt.f32.partialorder %v159, 0.0004427343
    %v161 = vsel %vm160, %v158, %v155
    %v162 = vadd.f32 %v146, %v161
    %v163 = vsel %vm147, %v148, %v162
    %v164 = vsel %vm132, 1, 0
    %vm165 = vcmp.eq.s32.totalorder %v164, 1
    %v166 = vsel %vm165, %v163, %v124
    %v167 = vsel %vm134, %v145, %v166
    %168 = vst [vmem:[#allocation7] sm:$0xff] %v167
    // Predicated region
    $region22: #{tpu_custom_call.1} parent=1 // pred_check
      _
    $region23: #{tpu_custom_call.1} parent=1 // pred_check_branch
      %170 = sbr.rel (0) target = $region25
    $region24: #{tpu_custom_call.1} parent=1 // pred_region
      %s172 = ssub.s32 128, 128
      %173 = vsyncadd [#allocation4], %s172
      %s175 = sshll.u32 [#allocation7], 4
      %s176 = int_to_ptr.vmem [resolvable:$true] %s175
      %178 = dma.vmem_to_hbm [thread:$0]  %s176, 128, %s3, [#allocation4]
    $region25: #{tpu_custom_call.1} parent=1 // pred_fallthru
      _
    // Predicated region
    $region26: #{tpu_custom_call.1} parent=1 // pred_check
      _
    $region27: #{tpu_custom_call.1} parent=1 // pred_check_branch
      %180 = sbr.rel (0) target = $region29
    $region28: #{tpu_custom_call.1} parent=1 // pred_region
      %181 = dma.done [#allocation4], 128
    $region29: #{tpu_custom_call.1} parent=1 // pred_fallthru
      _
    %182 = vsyncpa [#allocation3], 1
    %183 = vsyncpa [#allocation6], 1
    %184 = vsyncpa [#allocation4], 1

</llo_original>
